<compile_context>
chip_gen: v5e
topology: v5e:2x2
jax: 0.10.0
libtpu: 0.0.40
codegen_flags: <defaults>
</compile_context>

<pallas_src>
import jax
import jax.numpy as jnp
from jax.experimental import pallas as pl
from jax.experimental.pallas import tpu as pltpu

ALPHA = 0.5  # DirGNNConv default mixing coefficient


def _fused_linear_kernel(x_ref, w_ref, b_ref, o_ref):
    """o = x @ W_comb + b_comb  — one MXU push + one VPU add per row tile."""
    y = jnp.dot(x_ref[...], w_ref[...], preferred_element_type=jnp.float32)
    o_ref[...] = (y + b_ref[...]).astype(o_ref.dtype)


def init_params(key, seq_len):
    """Deterministic synthetic init matching the module's parameter shapes."""
    lout = seq_len // 2
    ks = jax.random.split(key, 6)
    scale = 1.0 / jnp.sqrt(jnp.float32(seq_len))
    return {
        # stored pre-transposed: (L, Lout)
        "w_in":   jax.random.normal(ks[0], (seq_len, lout), jnp.float32) * scale,
        "b_in":   jax.random.normal(ks[1], (1, lout), jnp.float32) * scale,
        "w_out":  jax.random.normal(ks[2], (seq_len, lout), jnp.float32) * scale,
        "b_out":  jax.random.normal(ks[3], (1, lout), jnp.float32) * scale,
        "w_root": jax.random.normal(ks[4], (seq_len, lout), jnp.float32) * scale,
        "b_root": jax.random.normal(ks[5], (1, lout), jnp.float32) * scale,
    }


def _choose_row_tile(M, cap=512):
    """Row tile: multiple of 8 dividing M, <= cap, preferring >= 2 grid steps
    (keeps both v7x TensorCores busy, bounds double-buffered VMEM)."""
    if M % 8 != 0:
        return M  # single full-extent tile trivially satisfies the (8,128) rule
    candidates = [t for t in range(8, min(M, cap) + 1, 8) if M % t == 0]
    if not candidates:
        return M
    multi_step = [t for t in candidates if M // t >= 2]
    return max(multi_step) if multi_step else max(candidates)


@jax.jit
def _graph_feature_extraction_impl(x, params):
    """x: (B, N, L) -> (B, N, L//2).  Graph structure is irrelevant for K=1 ChebConv."""
    B, N, L = x.shape
    Lout = params["w_in"].shape[1]
    M = B * N
    tm = _choose_row_tile(M)
    x2 = x.reshape(M, L)

    # Exact algebraic fold of the three branches (tiny one-time op; XLA fuses it).
    w_comb = ALPHA * params["w_out"] + (1.0 - ALPHA) * params["w_in"] + params["w_root"]
    b_comb = ALPHA * params["b_out"] + (1.0 - ALPHA) * params["b_in"] + params["b_root"]

    out = pl.pallas_call(
        _fused_linear_kernel,
        out_shape=jax.ShapeDtypeStruct((M, Lout), x.dtype),
        grid_spec=pltpu.PrefetchScalarGridSpec(
            num_scalar_prefetch=0,
            grid=(M // tm,),
            in_specs=[
                pl.BlockSpec((tm, L), lambda i: (i, 0)),      # row tile of x
                pl.BlockSpec((L, Lout), lambda i: (0, 0)),    # folded weight (resident)
                pl.BlockSpec((1, Lout), lambda i: (0, 0)),    # folded bias (resident)
            ],
            out_specs=pl.BlockSpec((tm, Lout), lambda i: (i, 0)),
        ),
        compiler_params=pltpu.CompilerParams(
            dimension_semantics=("parallel",),
        ),
    )(x2, w_comb, b_comb)

    return out.reshape(B, N, Lout)


def graph_feature_extraction(x, At, params):
    """Public wrapper keeping the module's (x, At) signature.

    At is accepted for API fidelity only: ChebConv with K=1 ignores graph structure,
    so the adjacency is dropped here *before* the jit boundary (no wasted transfer).
    """
    del At
    return _graph_feature_extraction_impl(x, params)


def _reference(x, params):
    """Pure-JAX per-branch reference (un-folded) to verify the algebraic fold."""
    B, N, L = x.shape
    x2 = x.reshape(B * N, L)
    y_in = x2 @ params["w_in"] + params["b_in"]
    y_out = x2 @ params["w_out"] + params["b_out"]
    y_root = x2 @ params["w_root"] + params["b_root"]
    y = ALPHA * y_out + (1.0 - ALPHA) * y_in + y_root
    return y.reshape(B, N, -1)


if __name__ == "__main__":
    B, node_n, seq_len = 2, 8, 16

    key = jax.random.PRNGKey(0)
    kx, kA, kp = jax.random.split(key, 3)

    x = jax.random.normal(kx, (B, node_n, seq_len), jnp.float32)
    # Binary adjacency per batch element (API fidelity only; unused for K=1 ChebConv).
    At = (jax.random.uniform(kA, (B, node_n, node_n)) > 0.5).astype(jnp.int32)
    params = init_params(kp, seq_len)

    out = graph_feature_extraction(x, At, params)
    out = jax.block_until_ready(out)

    ref = _reference(x, params)
    assert out.shape == (B, node_n, seq_len // 2), out.shape
    assert bool(jnp.allclose(out, ref, atol=1e-5, rtol=1e-5))

    print("KERNEL_OK")
</pallas_src>

<mosaic_0001>
module attributes {stable_mosaic.version = 11 : i64} {
  func.func @_fused_linear_kernel(%arg0: i32, %arg1: memref<8x16xf32, #tpu.memory_space<vmem>>, %arg2: memref<16x8xf32, #tpu.memory_space<vmem>>, %arg3: memref<1x8xf32, #tpu.memory_space<vmem>>, %arg4: memref<8x8xf32, #tpu.memory_space<vmem>>) attributes {dimension_semantics = [#tpu.dimension_semantics<parallel>], iteration_bounds = array<i64: 2>, scalar_prefetch = 0 : i64, scratch_operands = 0 : i64, tpu.core_type = #tpu.core_type<tc>, window_params = [{transform_indices = @transform_0, window_bounds = array<i64: 8, 16>}, {pipeline_mode = #tpu.pipeline_mode<synchronous>, transform_indices = @transform_1, window_bounds = array<i64: 16, 8>}, {pipeline_mode = #tpu.pipeline_mode<synchronous>, transform_indices = @transform_2, window_bounds = array<i64: 1, 8>}, {transform_indices = @transform_3, window_bounds = array<i64: 8, 8>}]} {
    %c0 = arith.constant 0 : index
    %c0_0 = arith.constant 0 : index
    %0 = vector.load %arg1[%c0, %c0_0] : memref<8x16xf32, #tpu.memory_space<vmem>>, vector<8x16xf32>
    %c0_1 = arith.constant 0 : index
    %c0_2 = arith.constant 0 : index
    %1 = vector.load %arg2[%c0_1, %c0_2] : memref<16x8xf32, #tpu.memory_space<vmem>>, vector<16x8xf32>
    %cst = arith.constant dense<0.000000e+00> : vector<8x8xf32>
    %2 = tpu.matmul %0, %1, %cst {dimension_numbers = #tpu.dot_dimension_numbers<[1], [0], [0], [1], [0, 0, 1, 1], [], []>} : vector<8x16xf32>, vector<16x8xf32>, vector<8x8xf32> -> vector<8x8xf32>
    %c0_3 = arith.constant 0 : index
    %c0_4 = arith.constant 0 : index
    %3 = vector.load %arg3[%c0_3, %c0_4] : memref<1x8xf32, #tpu.memory_space<vmem>>, vector<1x8xf32>
    %4 = vector.broadcast %3 : vector<1x8xf32> to vector<8x8xf32>
    %5 = arith.addf %2, %4 : vector<8x8xf32>
    %c0_5 = arith.constant 0 : index
    %c0_6 = arith.constant 0 : index
    %6 = vector.load %arg4[%c0_5, %c0_6] : memref<8x8xf32, #tpu.memory_space<vmem>>, vector<8x8xf32>
    tpu.vector_store %arg4[%c0_5, %c0_6], %5 {strides = array<i32>} : memref<8x8xf32, #tpu.memory_space<vmem>>, vector<8x8xf32>,
    return
  }
  func.func @transform_0(%arg0: i32) -> (i32, i32) {
    %c0_i32 = arith.constant 0 : i32
    %c0_i32_0 = arith.constant 0 : i32
    return %arg0, %c0_i32 : i32, i32
  }
  func.func @transform_1(%arg0: i32) -> (i32, i32) {
    %c0_i32 = arith.constant 0 : i32
    %c0_i32_0 = arith.constant 0 : i32
    %c0_i32_1 = arith.constant 0 : i32
    return %c0_i32, %c0_i32_0 : i32, i32
  }
  func.func @transform_2(%arg0: i32) -> (i32, i32) {
    %c0_i32 = arith.constant 0 : i32
    %c0_i32_0 = arith.constant 0 : i32
    %c0_i32_1 = arith.constant 0 : i32
    return %c0_i32, %c0_i32_0 : i32, i32
  }
  func.func @transform_3(%arg0: i32) -> (i32, i32) {
    %c0_i32 = arith.constant 0 : i32
    %c0_i32_0 = arith.constant 0 : i32
    return %arg0, %c0_i32 : i32, i32
  }
}

</mosaic_0001>

<llo_original>
// kernel: _graph_feature_extraction_impl.1
$region0: #{_graph_feature_extraction_impl.1}
  #allocation0 [shape = 'u32[]', space=smem, size = 0x4, offset = 0x4, fixed_abs, tag = 'smem constant byte address 0x4 - core index']
  #allocation1 [shape = 'u32[72,128]{1,0:T(1,128)}', space=vmem, size = 0x9000, scoped, tag = 'internal scratch']
  %s0 = inlined_call_operand.vmem [shape: f32[16,16], index: 0, kind: input, shape index: {}]
  %s1 = inlined_call_operand.vmem [shape: f32[16,8], index: 1, kind: input, shape index: {}]
  %s2 = inlined_call_operand.vmem [shape: f32[1,8], index: 2, kind: input, shape index: {}]
  %s3 = inlined_call_operand.hbm [shape: f32[16,8], index: 3, kind: output, shape index: {}]
  %s4 = sld [smem:[#allocation0]]
  $region45: #{_graph_feature_extraction_impl.1} parent=0
    _
  %s6 = ssub.s32 1, %s4
  %s7 = scalar_select 0, %s6, %s4
  $region1: #{_graph_feature_extraction_impl.1} parent=0
    #allocation2 [shape = 'u8[8192]{0}', space=vmem, size = 0x2000, scoped, tag = 'output window, operand 0']
    #allocation3 [shape = 's32[2]{0}', space=sflag, size = 0x8, scoped, tag = 'scoped memory for _graph_feature_extraction_impl.1']
    %8 = vsyncpa [#allocation3], 0
    %s9 = scalar_lea.sflag [#allocation3], 1
    %10 = vsyncpa %s9, 0
    loop: start=0, step=1, limit=4
    $region2: #{_graph_feature_extraction_impl.1} parent=1 // loop_pre_header
      _
    $region3: #{_graph_feature_extraction_impl.1} parent=1 // loop_header
      %s12 = sphi 0, %s16
      %p13 = scmp.ge.s32.totalorder %s12, 4
      %s22 = sphi 0, %s24
      %s25 = sphi 0, %s22
      %s26 = sphi 0, %s25
      %s42 = sphi 0, %s26
      %s46 = sphi 0, %s46
      %s48 = sphi 0, %s46
      %s49 = sphi 0, %s48
      %s63 = sphi 0, %s49
      %s67 = sphi 0, %s67
      %s69 = sphi 0, %s67
      %s70 = sphi 0, %s69
      %s84 = sphi 0, %s70
      %s90 = sphi 0, %s92
      %s93 = sphi 0, %s90
      %s94 = sphi 0, %s93
      %s110 = sphi 0, %s94
    $region4: #{_graph_feature_extraction_impl.1} parent=1 // loop_header_branch
      %15 = sbr.rel (%p13) target = $region8
    $region5: #{_graph_feature_extraction_impl.1} parent=1 // loop_body
      %s17 = ssub.s32 %s12, 1
      %s18 = ssub.s32 %s12, 2
      %s19 = sadd.s32 %s12, 1
      %s20 = ssub.s32 %s12, %s19
      %p21 = scmp.eq.s32.totalorder %s20, 0
      %s23 = sadd.s32 %s22, 1
      %s24 = scalar_select %p21, %s22, %s23
      %p27 = pneg %p21
      %p28 = scmp.eq.s32.totalorder %s12, 1
      %p29 = por %p27, %p28
      %p30 = scmp.ne.s32.totalorder %s22, %s25
      %p31 = scmp.eq.s32.totalorder %s12, 0
      %p32 = por %p30, %p31
      %p33 = scmp.ne.s32.totalorder %s22, %s25
      %p34 = scmp.eq.s32.totalorder %s17, 1
      %p35 = por %p33, %p34
      %p36 = scmp.ne.s32.totalorder %s25, %s26
      %p37 = scmp.eq.s32.totalorder %s17, 0
      %p38 = por %p36, %p37
      %p39 = scmp.ne.s32.totalorder %s25, %s26
      %p40 = scmp.eq.s32.totalorder %s18, 1
      %p41 = por %p39, %p40
      %p43 = scmp.ne.s32.totalorder %s26, %s42
      %p44 = scmp.eq.s32.totalorder %s18, 0
      %p45 = por %p43, %p44
      %s47 = sadd.s32 %s46, 1
      %p50 = scmp.eq.s32.totalorder %s12, 1
      %p51 = scmp.ne.s32.totalorder %s46, %s48
      %p52 = scmp.eq.s32.totalorder %s12, 0
      %p53 = por %p51, %p52
      %p54 = scmp.ne.s32.totalorder %s46, %s48
      %p55 = scmp.eq.s32.totalorder %s17, 1
      %p56 = por %p54, %p55
      %p57 = scmp.ne.s32.totalorder %s48, %s49
      %p58 = scmp.eq.s32.totalorder %s17, 0
      %p59 = por %p57, %p58
      %p60 = scmp.ne.s32.totalorder %s48, %s49
      %p61 = scmp.eq.s32.totalorder %s18, 1
      %p62 = por %p60, %p61
      %p64 = scmp.ne.s32.totalorder %s49, %s63
      %p65 = scmp.eq.s32.totalorder %s18, 0
      %p66 = por %p64, %p65
      %s68 = sadd.s32 %s67, 1
      %p71 = scmp.eq.s32.totalorder %s12, 1
      %p72 = scmp.ne.s32.totalorder %s67, %s69
      %p73 = scmp.eq.s32.totalorder %s12, 0
      %p74 = por %p72, %p73
      %p75 = scmp.ne.s32.totalorder %s67, %s69
      %p76 = scmp.eq.s32.totalorder %s17, 1
      %p77 = por %p75, %p76
      %p78 = scmp.ne.s32.totalorder %s69, %s70
      %p79 = scmp.eq.s32.totalorder %s17, 0
      %p80 = por %p78, %p79
      %p81 = scmp.ne.s32.totalorder %s69, %s70
      %p82 = scmp.eq.s32.totalorder %s18, 1
      %p83 = por %p81, %p82
      %p85 = scmp.ne.s32.totalorder %s70, %s84
      %p86 = scmp.eq.s32.totalorder %s18, 0
      %p87 = por %p85, %p86
      %s88 = ssub.s32 %s12, %s19
      %p89 = scmp.eq.s32.totalorder %s88, 0
      %s91 = sadd.s32 %s90, 1
      %s92 = scalar_select %p89, %s90, %s91
      %p95 = pneg %p89
      %p96 = scmp.eq.s32.totalorder %s12, 1
      %p97 = por %p95, %p96
      %p98 = scmp.ne.s32.totalorder %s90, %s93
      %p99 = scmp.eq.s32.totalorder %s12, 0
      %p100 = por %p98, %p99
      %p101 = scmp.ne.s32.totalorder %s90, %s93
      %p102 = scmp.eq.s32.totalorder %s17, 1
      %p103 = por %p101, %p102
      %p104 = scmp.ne.s32.totalorder %s93, %s94
      %p105 = scmp.eq.s32.totalorder %s17, 0
      %p106 = por %p104, %p105
      %p107 = scmp.ne.s32.totalorder %s93, %s94
      %p108 = scmp.eq.s32.totalorder %s18, 1
      %p109 = por %p107, %p108
      %p111 = scmp.ne.s32.totalorder %s94, %s110
      %p112 = scmp.eq.s32.totalorder %s18, 0
      %p113 = por %p111, %p112
      %p114 = scmp.le.s32.totalorder 1, %s12
      %p115 = scmp.lt.s32.totalorder %s12, 3
      %p116 = pnand %p114, %p115
      %p117 = pneg %p116
      // Predicated region
      $region9: #{_graph_feature_extraction_impl.1} parent=5 // pred_check
        _
      $region10: #{_graph_feature_extraction_impl.1} parent=5 // pred_check_branch
        %119 = sbr.rel (%p116) target = $region12
      $region11: #{_graph_feature_extraction_impl.1} parent=5 // pred_region
        %s120 = ssub.s32 %s12, 1
        // Predicated region
        $region13: #{_graph_feature_extraction_impl.1} parent=11 // pred_check
          %p121 = pneg %p59
        $region14: #{_graph_feature_extraction_impl.1} parent=11 // pred_check_branch
          %123 = sbr.rel (%p121) target = $region16
        $region15: #{_graph_feature_extraction_impl.1} parent=11 // pred_region
          _
        $region16: #{_graph_feature_extraction_impl.1} parent=11 // pred_fallthru
          _
        // Predicated region
        $region17: #{_graph_feature_extraction_impl.1} parent=11 // pred_check
          %p124 = pneg %p80
        $region18: #{_graph_feature_extraction_impl.1} parent=11 // pred_check_branch
          %126 = sbr.rel (%p124) target = $region20
        $region19: #{_graph_feature_extraction_impl.1} parent=11 // pred_region
          _
        $region20: #{_graph_feature_extraction_impl.1} parent=11 // pred_fallthru
          _
      $region12: #{_graph_feature_extraction_impl.1} parent=5 // pred_fallthru
        _
      %p127 = scmp.lt.s32.totalorder %s12, 2
      // Predicated region
      $region21: #{_graph_feature_extraction_impl.1} parent=5 // pred_check
        %p128 = pneg %p127
      $region22: #{_graph_feature_extraction_impl.1} parent=5 // pred_check_branch
        %130 = sbr.rel (%p128) target = $region24
      $region23: #{_graph_feature_extraction_impl.1} parent=5 // pred_region
        // Predicated region
        $region25: #{_graph_feature_extraction_impl.1} parent=23 // pred_check
          %p131 = pneg %p32
        $region26: #{_graph_feature_extraction_impl.1} parent=23 // pred_check_branch
          %133 = sbr.rel (%p131) target = $region28
        $region27: #{_graph_feature_extraction_impl.1} parent=23 // pred_region
          %p134 = scmp.lt.s32.totalorder %s12, 1
          %s135 = scalar_select %p134, %s12, 1
          %s136 = smul.addr %s135, 8
          %s137 = scalar_lea.vmem %s0, %s136
        $region28: #{_graph_feature_extraction_impl.1} parent=23 // pred_fallthru
          _
      $region24: #{_graph_feature_extraction_impl.1} parent=5 // pred_fallthru
        _
      %p138 = scmp.le.s32.totalorder 1, %s12
      %p139 = scmp.lt.s32.totalorder %s12, 3
      %p140 = pnand %p138, %p139
      %p141 = pneg %p140
      // Predicated region
      $region29: #{_graph_feature_extraction_impl.1} parent=5 // pred_check
        _
      $region30: #{_graph_feature_extraction_impl.1} parent=5 // pred_check_branch
        %143 = sbr.rel (%p140) target = $region32
      $region31: #{_graph_feature_extraction_impl.1} parent=5 // pred_region
        %s144 = ssub.s32 %s12, 1
        %p145 = scmp.lt.s32.totalorder %s17, 1
        %s146 = scalar_select %p145, %s17, 1
        %s147 = smul.addr %s146, 8
        %s148 = scalar_lea.vmem %s0, %s147
        %p149 = pneg %p38
        %p150 = pneg %p35
        %p151 = pneg %p59
        %p152 = pneg %p56
        %p153 = pneg %p80
        %p154 = pneg %p77
        %p155 = pneg %p106
        %p156 = pneg %p103
        %s157 = sand.u32 %s93, 1
        %s158 = scalar_lea.sflag [#allocation3], %s157
        %s159 = sand.u32 %s93, 1
        %s160 = smul.addr %s159, 8
        %s161 = scalar_lea.vmem [#allocation2], %s160
        %p162 = scmp.lt.s32.totalorder %s17, 1
        %s163 = scalar_select %p162, %s17, 1
        %s164 = smul.addr %s163, 8
        %s165 = scalar_lea.vmem %s0, %s164
        %v166 = vld [vmem:[%s165] sm:$0xff]
        %v167 = vld [vmem:[%s1] sm:$0xff]
        %v168 = vld [vmem:[%s1 + $0x8] sm:$0xff]
        %v169 = vld [vmem:[%s2] sm:$0x1]
        %v171 = vperm.slane %v169, 0
        %vm173 = vcmask 130048
        %v175 = vsel %vm173, %v166, 0
        %177 = vmatpush.msra.mxu0 0.0
        %178 = vmatpush.msra.mxu0 0.0
        %179 = vmatpush.msra.mxu0 0.0
        %180 = vmatpush.msra.mxu0 0.0
        %181 = vmatpush.msra.mxu0 0.0
        %182 = vmatpush.msra.mxu0 0.0
        %183 = vmatpush.msra.mxu0 0.0
        %184 = vmatpush.msra.mxu0 0.0
        %185 = vmatpush.msra.mxu0 0.0
        %186 = vmatpush.msra.mxu0 0.0
        %187 = vmatpush.msra.mxu0 0.0
        %188 = vmatpush.msra.mxu0 0.0
        %189 = vmatpush.msra.mxu0 0.0
        %190 = vmatpush.msra.mxu0 0.0
        %191 = vmatpush.msra.mxu0 %v168
        %192 = vmatpush.msra.mxu0 %v167
        %193 = vmatmul.f32.gmra.mxu0 %v175
        %v194 = vpop.f32.mrf.mxu0
        %v195 = vadd.f32 %v171, %v194
        %196 = vdwg.mxu0
        %vm197 = vcmask 64512
        %198 = vst.msk [vmem:[%s161] sm:$0xff] %vm197, %v195
        %s199 = sand.u32 %s93, 1
        %s200 = scalar_lea.sflag [#allocation3], %s199
        %s201 = sand.u32 %s93, 1
        %s202 = smul.addr %s201, 8
        %s203 = scalar_lea.vmem [#allocation2], %s202
        // Predicated region
        $region33: #{_graph_feature_extraction_impl.1} parent=31 // pred_check
          %p204 = pneg %p103
        $region34: #{_graph_feature_extraction_impl.1} parent=31 // pred_check_branch
          %206 = sbr.rel (%p204) target = $region36
        $region35: #{_graph_feature_extraction_impl.1} parent=31 // pred_region
          %208 = vsyncadd %s200, 0
          %s209 = smul.addr %s17, 8
          %s210 = scalar_lea.hbm %s3, %s209
          %s212 = sshll.u32 %s203, 4
          %s213 = int_to_ptr.vmem [resolvable:$true] %s212
          %s214 = sshll.u32 %s210, 4
          %s215 = int_to_ptr.hbm [resolvable:$true] %s214
          %217 = dma.vmem_to_hbm [thread:$0]  %s213, 128, %s215, %s200
        $region36: #{_graph_feature_extraction_impl.1} parent=31 // pred_fallthru
          _
      $region32: #{_graph_feature_extraction_impl.1} parent=5 // pred_fallthru
        _
      %p218 = scmp.le.s32.totalorder 2, %s12
      // Predicated region
      $region37: #{_graph_feature_extraction_impl.1} parent=5 // pred_check
        %p219 = pneg %p218
      $region38: #{_graph_feature_extraction_impl.1} parent=5 // pred_check_branch
        %221 = sbr.rel (%p219) target = $region40
      $region39: #{_graph_feature_extraction_impl.1} parent=5 // pred_region
        %s222 = ssub.s32 %s12, 2
        // Predicated region
        $region41: #{_graph_feature_extraction_impl.1} parent=39 // pred_check
          %p223 = pneg %p109
        $region42: #{_graph_feature_extraction_impl.1} parent=39 // pred_check_branch
          %225 = sbr.rel (%p223) target = $region44
        $region43: #{_graph_feature_extraction_impl.1} parent=39 // pred_region
          %s226 = sand.u32 %s94, 1
          %s227 = scalar_lea.sflag [#allocation3], %s226
          %s228 = sand.u32 %s94, 1
          %s229 = smul.addr %s228, 8
          %s230 = scalar_lea.vmem [#allocation2], %s229
          %232 = dma.done %s227, 128
        $region44: #{_graph_feature_extraction_impl.1} parent=39 // pred_fallthru
          _
      $region40: #{_graph_feature_extraction_impl.1} parent=5 // pred_fallthru
        _
    $region6: #{_graph_feature_extraction_impl.1} parent=1 // loop_footer
      %s16 = sadd.s32 1, %s12
    $region7: #{_graph_feature_extraction_impl.1} parent=1 // loop_footer_branch
      %11 = sbr.rel target = $region3
    $region8: #{_graph_feature_extraction_impl.1} parent=1 // loop_exit
      _
    %233 = vsyncpa [#allocation3], 1
    %s234 = scalar_lea.sflag [#allocation3], 1
    %235 = vsyncpa %s234, 1

</llo_original>
